<compile_context>
chip_gen: v6e
topology: v6e:2x2x1
jax: 0.10.0
libtpu: 0.0.40
codegen_flags: <defaults>
</compile_context>

<pallas_src>
import jax
import jax.numpy as jnp
from jax.experimental import pallas as pl
from jax.experimental.pallas import tpu as pltpu


def linear_kernel(x_ref, wb_ref, o_ref):
    # x_ref:  (B, IN)       in VMEM
    # wb_ref: (IN+1, OUT)   in VMEM: rows [0:IN] = W.T, row [IN] = bias
    # o_ref:  (B, OUT)      in VMEM
    in_features = wb_ref.shape[0] - 1
    w_t = wb_ref[0:in_features, :]        # (IN, OUT) -- no transpose needed
    b_row = wb_ref[in_features:in_features + 1, :]  # (1, OUT)
    acc = jnp.dot(x_ref[...], w_t, preferred_element_type=jnp.float32)
    o_ref[...] = (acc + b_row).astype(o_ref.dtype)


@jax.jit
def toy_model2_forward(x, weight, bias):
    """Pallas equivalent of ToyModel2.forward: nn.Linear(10, 5)(x).

    x:      (B, 10) float32
    weight: (5, 10) float32  (torch.nn.Linear.weight layout)
    bias:   (5,)    float32
    returns (B, 5)  float32
    """
    B, _ = x.shape
    OUT = weight.shape[0]

    # Pack [W.T ; b] -> (IN+1, OUT). Done once under jit, outside the kernel,
    # so the kernel sees a transpose-free RHS and only two input DMAs total.
    wb = jnp.concatenate([weight.T, bias.reshape(1, OUT)], axis=0)

    return pl.pallas_call(
        linear_kernel,
        out_shape=jax.ShapeDtypeStruct((B, OUT), x.dtype),
        in_specs=[
            pl.BlockSpec(memory_space=pltpu.MemorySpace.VMEM),  # x, whole array
            pl.BlockSpec(memory_space=pltpu.MemorySpace.VMEM),  # [W.T ; b], whole array
        ],
        out_specs=pl.BlockSpec(memory_space=pltpu.MemorySpace.VMEM),
    )(x, wb)


if __name__ == "__main__":
    key = jax.random.PRNGKey(0)
    k_x, k_w, k_b = jax.random.split(key, 3)

    B, IN, OUT = 8, 10, 5

    # Deterministic parameter init mimicking torch.nn.Linear default:
    # uniform(-1/sqrt(in_features), 1/sqrt(in_features))
    bound = 1.0 / jnp.sqrt(jnp.float32(IN))
    weight = jax.random.uniform(k_w, (OUT, IN), jnp.float32, -bound, bound)
    bias = jax.random.uniform(k_b, (OUT,), jnp.float32, -bound, bound)

    x = jax.random.normal(k_x, (B, IN), jnp.float32)

    out = toy_model2_forward(x, weight, bias)
    out = jax.block_until_ready(out)

    # Reference check against plain JAX (same semantics as torch Linear)
    ref = x @ weight.T + bias
    assert out.shape == (B, OUT)
    assert jnp.allclose(out, ref, atol=1e-5, rtol=1e-5)

    # TODO(synk): RPC/RRef plumbing (x_rref.to_here(), .cpu(), threading.Lock)
    # is distributed-runtime glue with no Pallas equivalent; only the Linear
    # compute is implemented.

    print("KERNEL_OK")
</pallas_src>

<mosaic_0001>
module attributes {stable_mosaic.version = 11 : i64} {
  func.func @linear_kernel(%arg0: memref<8x10xf32, #tpu.memory_space<vmem>>, %arg1: memref<11x5xf32, #tpu.memory_space<vmem>>, %arg2: memref<8x5xf32, #tpu.memory_space<vmem>>) attributes {dimension_semantics = [], scalar_prefetch = 0 : i64, scratch_operands = 0 : i64, tpu.core_type = #tpu.core_type<tc>} {
    %c0 = arith.constant 0 : index
    %c0_0 = arith.constant 0 : index
    %0 = vector.load %arg1[%c0, %c0_0] : memref<11x5xf32, #tpu.memory_space<vmem>>, vector<10x5xf32>
    %c10 = arith.constant 10 : index
    %c0_1 = arith.constant 0 : index
    %1 = vector.load %arg1[%c10, %c0_1] : memref<11x5xf32, #tpu.memory_space<vmem>>, vector<1x5xf32>
    %c0_2 = arith.constant 0 : index
    %c0_3 = arith.constant 0 : index
    %2 = vector.load %arg0[%c0_2, %c0_3] : memref<8x10xf32, #tpu.memory_space<vmem>>, vector<8x10xf32>
    %cst = arith.constant dense<0.000000e+00> : vector<8x5xf32>
    %3 = tpu.matmul %2, %0, %cst {dimension_numbers = #tpu.dot_dimension_numbers<[1], [0], [0], [1], [0, 0, 1, 1], [], []>} : vector<8x10xf32>, vector<10x5xf32>, vector<8x5xf32> -> vector<8x5xf32>
    %4 = vector.broadcast %1 : vector<1x5xf32> to vector<8x5xf32>
    %5 = arith.addf %3, %4 : vector<8x5xf32>
    %c0_4 = arith.constant 0 : index
    %c0_5 = arith.constant 0 : index
    %6 = vector.load %arg2[%c0_4, %c0_5] : memref<8x5xf32, #tpu.memory_space<vmem>>, vector<8x5xf32>
    tpu.vector_store %arg2[%c0_4, %c0_5], %5 {strides = array<i32>} : memref<8x5xf32, #tpu.memory_space<vmem>>, vector<8x5xf32>,
    return
  }
}

</mosaic_0001>

<llo_original>
// kernel: toy_model2_forward.1
$region0: #{toy_model2_forward.1}
  #allocation0 [shape = 'u32[]', space=smem, size = 0x4, offset = 0x4, fixed_abs, tag = 'smem constant byte address 0x4 - core index']
  #allocation1 [shape = 'u32[144,128]{1,0:T(1,128)}', space=vmem, size = 0x12000, scoped, tag = 'internal scratch']
  %s0 = inlined_call_operand.vmem [shape: f32[8,10], index: 0, kind: input, shape index: {}]
  %s1 = inlined_call_operand.vmem [shape: f32[11,5], index: 1, kind: input, shape index: {}]
  %s2 = inlined_call_operand.hbm [shape: f32[8,5], index: 2, kind: output, shape index: {}]
  %s3 = sld [smem:[#allocation0]]
  $region18: #{toy_model2_forward.1} parent=0
    _
  %s5 = ssub.s32 1, %s3
  %s6 = scalar_select 0, %s5, %s3
  $region1: #{toy_model2_forward.1} parent=0
    #allocation2 [shape = 'u8[4096]{0}', space=vmem, size = 0x1000, scoped, tag = 'output window, operand 0, single buffered']
    #allocation3 [shape = 's32[1]{0}', space=sflag, size = 0x4, scoped, tag = 'scoped memory for toy_model2_forward.1']
    %7 = vsyncpa [#allocation3], 0
    // Predicated region
    $region2: #{toy_model2_forward.1} parent=1 // pred_check
      _
    $region3: #{toy_model2_forward.1} parent=1 // pred_check_branch
      %9 = sbr.rel (0) target = $region5
    $region4: #{toy_model2_forward.1} parent=1 // pred_region
      _
    $region5: #{toy_model2_forward.1} parent=1 // pred_fallthru
      _
    // Predicated region
    $region6: #{toy_model2_forward.1} parent=1 // pred_check
      _
    $region7: #{toy_model2_forward.1} parent=1 // pred_check_branch
      %11 = sbr.rel (0) target = $region9
    $region8: #{toy_model2_forward.1} parent=1 // pred_region
      _
    $region9: #{toy_model2_forward.1} parent=1 // pred_fallthru
      _
    %v12 = vld [vmem:[%s1] sm:$0xff]
    %v13 = vld [vmem:[%s1 + $0x8] sm:$0x3]
    %v14 = vld [vmem:[%s1 + $0xa] sm:$0x1]
    %v15 = vld [vmem:[%s0] sm:$0xff]
    %v16 = vlaneseq
    %v17 = vshrl.u32 %v16, 7
    %v18 = vsub.s32 0, %v17
    %v19 = vrot.slane %v14, %v18
    %vm20 = vcmask 80896
    %v22 = vsel %vm20, %v15, 0
    %vm24 = vcmask 1041408
    %v26 = vsel %vm24, %v13, 0
    %28 = vmatprep.subr.mxu0 0.0
    %29 = vmatpush1.msra.mxu0 0.0
    %30 = vmatprep.subr.mxu0 0.0
    %31 = vmatpush1.msra.mxu0 0.0
    %32 = vmatprep.subr.mxu0 0.0
    %33 = vmatpush1.msra.mxu0 0.0
    %34 = vmatprep.subr.mxu0 0.0
    %35 = vmatpush1.msra.mxu0 0.0
    %36 = vmatprep.subr.mxu0 0.0
    %37 = vmatpush1.msra.mxu0 0.0
    %38 = vmatprep.subr.mxu0 0.0
    %39 = vmatpush1.msra.mxu0 0.0
    %40 = vmatprep.subr.mxu0 0.0
    %41 = vmatpush1.msra.mxu0 0.0
    %42 = vmatprep.subr.mxu0 0.0
    %43 = vmatpush1.msra.mxu0 0.0
    %44 = vmatprep.subr.mxu0 0.0
    %45 = vmatpush1.msra.mxu0 0.0
    %46 = vmatprep.subr.mxu0 0.0
    %47 = vmatpush1.msra.mxu0 0.0
    %48 = vmatprep.subr.mxu0 0.0
    %49 = vmatpush1.msra.mxu0 0.0
    %50 = vmatprep.subr.mxu0 0.0
    %51 = vmatpush1.msra.mxu0 0.0
    %52 = vmatprep.subr.mxu0 0.0
    %53 = vmatpush1.msra.mxu0 0.0
    %54 = vmatprep.subr.mxu0 0.0
    %55 = vmatpush1.msra.mxu0 0.0
    %56 = vmatprep.subr.mxu0 0.0
    %57 = vmatpush1.msra.mxu0 %v26
    %58 = vmatprep.subr.mxu0 0.0
    %59 = vmatpush1.msra.mxu0 %v12
    %60 = vmatprep.subr.mxu0 0.0
    %61 = vmatpush2.msra.mxu0 0.0
    %62 = vmatprep.subr.mxu0 0.0
    %63 = vmatpush2.msra.mxu0 0.0
    %64 = vmatprep.subr.mxu0 0.0
    %65 = vmatpush2.msra.mxu0 0.0
    %66 = vmatprep.subr.mxu0 0.0
    %67 = vmatpush2.msra.mxu0 0.0
    %68 = vmatprep.subr.mxu0 0.0
    %69 = vmatpush2.msra.mxu0 0.0
    %70 = vmatprep.subr.mxu0 0.0
    %71 = vmatpush2.msra.mxu0 0.0
    %72 = vmatprep.subr.mxu0 0.0
    %73 = vmatpush2.msra.mxu0 0.0
    %74 = vmatprep.subr.mxu0 0.0
    %75 = vmatpush2.msra.mxu0 0.0
    %76 = vmatprep.subr.mxu0 0.0
    %77 = vmatpush2.msra.mxu0 0.0
    %78 = vmatprep.subr.mxu0 0.0
    %79 = vmatpush2.msra.mxu0 0.0
    %80 = vmatprep.subr.mxu0 0.0
    %81 = vmatpush2.msra.mxu0 0.0
    %82 = vmatprep.subr.mxu0 0.0
    %83 = vmatpush2.msra.mxu0 0.0
    %84 = vmatprep.subr.mxu0 0.0
    %85 = vmatpush2.msra.mxu0 0.0
    %86 = vmatprep.subr.mxu0 0.0
    %87 = vmatpush2.msra.mxu0 0.0
    %88 = vmatprep.subr.mxu0 0.0
    %89 = vmatpush2.msra.mxu0 0.0
    %90 = vmatprep.subr.mxu0 0.0
    %91 = vmatpush2.msra.mxu0 0.0
    %92 = vmatprep.mubr.f32.mxu0 0.0
    %93 = vmatmul.mubr.f32.gmra.mxu0 %v22
    %v94 = vpop.f32.mrf.mxu0
    %v95 = vadd.f32 %v19, %v94
    %v96 = vpop.f32.mrf.mxu0
    %97 = vdwg.mxu0
    %vm98 = vcmask 39936
    %99 = vst.msk [vmem:[#allocation2] sm:$0xff] %vm98, %v95
    // Predicated region
    $region10: #{toy_model2_forward.1} parent=1 // pred_check
      _
    $region11: #{toy_model2_forward.1} parent=1 // pred_check_branch
      %101 = sbr.rel (0) target = $region13
    $region12: #{toy_model2_forward.1} parent=1 // pred_region
      %s103 = ssub.s32 128, 128
      %104 = vsyncadd [#allocation3], %s103
      %s106 = sshll.u32 [#allocation2], 4
      %s107 = int_to_ptr.vmem [resolvable:$true] %s106
      %109 = dma.vmem_to_hbm [thread:$0]  %s107, 128, %s2, [#allocation3]
    $region13: #{toy_model2_forward.1} parent=1 // pred_fallthru
      _
    // Predicated region
    $region14: #{toy_model2_forward.1} parent=1 // pred_check
      _
    $region15: #{toy_model2_forward.1} parent=1 // pred_check_branch
      %111 = sbr.rel (0) target = $region17
    $region16: #{toy_model2_forward.1} parent=1 // pred_region
      %112 = dma.done [#allocation3], 128
    $region17: #{toy_model2_forward.1} parent=1 // pred_fallthru
      _
    %113 = vsyncpa [#allocation3], 1

</llo_original>
